<compile_context>
chip_gen: v7x
topology: tpu7x:2x2x1
jax: 0.10.0
libtpu: 0.0.40
codegen_flags: <defaults>
</compile_context>

<pallas_src>
import functools

import jax
import jax.numpy as jnp
from jax.experimental import pallas as pl
from jax.experimental.pallas import tpu as pltpu

EPS = 1e-5  # nn.InstanceNorm1d default eps

# Small, TPU-friendly test shapes (points on the 128-lane axis).
BATCH = 4          # even -> both v7x TensorCores get grid steps
IN_CHANNEL = 64    # in_channel
STYLE_DIM = 32     # style_dim
NUM_POINTS = 256   # point-cloud length (lane axis, multiple of 128)


def _adaptive_point_norm_kernel(x_ref, style_ref, w_ref, b_ref, o_ref, *, C):
    """One batch element per grid step.

    x_ref:     (1, C, N)  f32   features to normalize
    style_ref: (1, S, N)  f32   per-point style codes
    w_ref:     (2C, S)    bf16  Conv1d(style_dim, 2C, 1) weight (k=1 squeezed)
    b_ref:     (2C, 1)    f32   Conv1d bias
    o_ref:     (1, C, N)  f32
    """
    x = x_ref[0]                                    # (C, N), points on lanes

    # 1x1 conv over channels == one MXU matmul, lane-dense (2C, N) output.
    # bf16 operands, f32 accumulation.
    st = style_ref[0].astype(jnp.bfloat16)          # (S, N)
    affine = jnp.dot(w_ref[...], st,
                     preferred_element_type=jnp.float32) + b_ref[...]
    gamma = affine[:C, :]                           # sublane slice, no lane traffic
    beta = affine[C:, :]

    # InstanceNorm1d (affine=False): per-(batch, channel) moments over the
    # point/lane axis, single fused pass via E[x] and E[x^2].
    mean = jnp.mean(x, axis=-1, keepdims=True)
    mean_sq = jnp.mean(x * x, axis=-1, keepdims=True)
    var = mean_sq - mean * mean
    x_hat = (x - mean) * jax.lax.rsqrt(var + EPS)

    o_ref[0] = gamma * x_hat + beta


def adaptive_point_norm_forward(x, style, weight, bias):
    """x: (B, C, N) f32, style: (B, S, N) f32,
    weight: (2C, S) f32 (Conv1d weight with the k=1 dim squeezed),
    bias: (2C,) f32.  Returns (B, C, N) f32."""
    B, C, N = x.shape
    S = style.shape[1]
    assert weight.shape == (2 * C, S) and bias.shape == (2 * C,)

    w_bf16 = weight.astype(jnp.bfloat16)            # MXU operand; f32 accumulate
    b_col = bias.astype(jnp.float32).reshape(2 * C, 1)

    kernel = functools.partial(_adaptive_point_norm_kernel, C=C)

    return pl.pallas_call(
        kernel,
        out_shape=jax.ShapeDtypeStruct((B, C, N), jnp.float32),
        grid=(B,),
        in_specs=[
            pl.BlockSpec((1, C, N), lambda i: (i, 0, 0)),   # x: one batch / step
            pl.BlockSpec((1, S, N), lambda i: (i, 0, 0)),   # style
            pl.BlockSpec((2 * C, S), lambda i: (0, 0)),     # weight (resident)
            pl.BlockSpec((2 * C, 1), lambda i: (0, 0)),     # bias   (resident)
        ],
        out_specs=pl.BlockSpec((1, C, N), lambda i: (i, 0, 0)),
        compiler_params=pltpu.CompilerParams(
            dimension_semantics=("parallel",)),
    )(x, style, w_bf16, b_col)
    # TODO(synk): for very long point clouds where a full (C, N) tile no longer
    # fits VMEM (v7x: 64 MiB), split N across the grid with a two-pass
    # (accumulate moments, then normalize) scheme.


def reference_forward(x, style, weight, bias):
    """Pure-JAX f32 mirror of the PyTorch module (for correctness check)."""
    hp = jax.lax.Precision.HIGHEST
    st = jnp.einsum("os,bsn->bon", weight, style, precision=hp) \
        + bias[None, :, None]
    gamma, beta = jnp.split(st, 2, axis=1)
    mean = jnp.mean(x, axis=-1, keepdims=True)
    var = jnp.var(x, axis=-1, keepdims=True)        # biased, as InstanceNorm1d
    x_hat = (x - mean) / jnp.sqrt(var + EPS)
    return gamma * x_hat + beta


if __name__ == "__main__":
    key = jax.random.PRNGKey(0)
    k_x, k_s, k_w = jax.random.split(key, 3)

    x = jax.random.normal(k_x, (BATCH, IN_CHANNEL, NUM_POINTS), jnp.float32)
    style = 0.25 * jax.random.normal(
        k_s, (BATCH, STYLE_DIM, NUM_POINTS), jnp.float32)
    # Conv1d init mirrors the module: weight ~ N(0,1); bias = [1]*C ++ [0]*C
    weight = jax.random.normal(k_w, (2 * IN_CHANNEL, STYLE_DIM), jnp.float32)
    bias = jnp.concatenate([jnp.ones((IN_CHANNEL,), jnp.float32),
                            jnp.zeros((IN_CHANNEL,), jnp.float32)])

    out = jax.jit(adaptive_point_norm_forward)(x, style, weight, bias)
    out = jax.block_until_ready(out)

    ref = reference_forward(x, style, weight, bias)
    assert out.shape == (BATCH, IN_CHANNEL, NUM_POINTS)
    assert bool(jnp.all(jnp.isfinite(out)))
    max_diff = jnp.max(jnp.abs(out - ref))
    assert bool(jnp.allclose(out, ref, atol=5e-2, rtol=5e-2)), \
        f"max abs diff {max_diff}"

    print("KERNEL_OK")
</pallas_src>

<mosaic_0001>
module attributes {stable_mosaic.version = 11 : i64} {
  func.func @_adaptive_point_norm_kernel(%arg0: i32, %arg1: memref<1x64x256xf32, #tpu.memory_space<vmem>>, %arg2: memref<1x32x256xf32, #tpu.memory_space<vmem>>, %arg3: memref<128x32xbf16, #tpu.memory_space<vmem>>, %arg4: memref<128x1xf32, #tpu.memory_space<vmem>>, %arg5: memref<1x64x256xf32, #tpu.memory_space<vmem>>) attributes {dimension_semantics = [#tpu.dimension_semantics<parallel>], iteration_bounds = array<i64: 4>, scalar_prefetch = 0 : i64, scratch_operands = 0 : i64, tpu.core_type = #tpu.core_type<tc>, window_params = [{transform_indices = @transform_0, window_bounds = array<i64: 1, 64, 256>}, {transform_indices = @transform_1, window_bounds = array<i64: 1, 32, 256>}, {pipeline_mode = #tpu.pipeline_mode<synchronous>, transform_indices = @transform_2, window_bounds = array<i64: 128, 32>}, {pipeline_mode = #tpu.pipeline_mode<synchronous>, transform_indices = @transform_3, window_bounds = array<i64: 128, 1>}, {transform_indices = @transform_4, window_bounds = array<i64: 1, 64, 256>}]} {
    %c0 = arith.constant 0 : index
    %c0_0 = arith.constant 0 : index
    %c0_1 = arith.constant 0 : index
    %0 = vector.load %arg1[%c0, %c0_0, %c0_1] : memref<1x64x256xf32, #tpu.memory_space<vmem>>, vector<1x64x256xf32>
    %1 = vector.shape_cast %0 : vector<1x64x256xf32> to vector<64x256xf32>
    %c0_2 = arith.constant 0 : index
    %c0_3 = arith.constant 0 : index
    %c0_4 = arith.constant 0 : index
    %2 = vector.load %arg2[%c0_2, %c0_3, %c0_4] : memref<1x32x256xf32, #tpu.memory_space<vmem>>, vector<1x32x256xf32>
    %3 = vector.shape_cast %2 : vector<1x32x256xf32> to vector<32x256xf32>
    %4 = arith.truncf %3 : vector<32x256xf32> to vector<32x256xbf16>
    %c0_5 = arith.constant 0 : index
    %c0_6 = arith.constant 0 : index
    %5 = vector.load %arg3[%c0_5, %c0_6] : memref<128x32xbf16, #tpu.memory_space<vmem>>, vector<128x32xbf16>
    %cst = arith.constant dense<0.000000e+00> : vector<128x256xf32>
    %6 = tpu.matmul %5, %4, %cst {dimension_numbers = #tpu.dot_dimension_numbers<[1], [0], [0], [1], [0, 0, 1, 1], [], []>} : vector<128x32xbf16>, vector<32x256xbf16>, vector<128x256xf32> -> vector<128x256xf32>
    %c0_7 = arith.constant 0 : index
    %c0_8 = arith.constant 0 : index
    %7 = vector.load %arg4[%c0_7, %c0_8] : memref<128x1xf32, #tpu.memory_space<vmem>>, vector<128x1xf32>
    %8 = vector.broadcast %7 : vector<128x1xf32> to vector<128x256xf32>
    %9 = arith.addf %6, %8 : vector<128x256xf32>
    %10 = vector.extract_strided_slice %9 {offsets = [0, 0], sizes = [64, 256], strides = [1, 1]} : vector<128x256xf32> to vector<64x256xf32>
    %11 = vector.extract_strided_slice %9 {offsets = [64, 0], sizes = [64, 256], strides = [1, 1]} : vector<128x256xf32> to vector<64x256xf32>
    %cst_9 = arith.constant dense<0.000000e+00> : vector<64xf32>
    %12 = vector.multi_reduction <add>, %1, %cst_9 [1] : vector<64x256xf32> to vector<64xf32>
    %13 = vector.shape_cast %12 : vector<64xf32> to vector<64x1xf32>
    %cst_10 = arith.constant 2.560000e+02 : f32
    %14 = vector.broadcast %cst_10 : f32 to vector<64x1xf32>
    %15 = arith.divf %13, %14 : vector<64x1xf32>
    %16 = arith.mulf %1, %1 : vector<64x256xf32>
    %cst_11 = arith.constant dense<0.000000e+00> : vector<64xf32>
    %17 = vector.multi_reduction <add>, %16, %cst_11 [1] : vector<64x256xf32> to vector<64xf32>
    %18 = vector.shape_cast %17 : vector<64xf32> to vector<64x1xf32>
    %cst_12 = arith.constant 2.560000e+02 : f32
    %19 = vector.broadcast %cst_12 : f32 to vector<64x1xf32>
    %20 = arith.divf %18, %19 : vector<64x1xf32>
    %21 = arith.mulf %15, %15 : vector<64x1xf32>
    %22 = arith.subf %20, %21 : vector<64x1xf32>
    %23 = vector.broadcast %15 : vector<64x1xf32> to vector<64x256xf32>
    %24 = arith.subf %1, %23 : vector<64x256xf32>
    %cst_13 = arith.constant 9.99999974E-6 : f32
    %25 = vector.broadcast %cst_13 : f32 to vector<64x1xf32>
    %26 = arith.addf %22, %25 : vector<64x1xf32>
    %27 = math.rsqrt %26 : vector<64x1xf32>
    %28 = vector.broadcast %27 : vector<64x1xf32> to vector<64x256xf32>
    %29 = arith.mulf %24, %28 : vector<64x256xf32>
    %30 = arith.mulf %10, %29 : vector<64x256xf32>
    %31 = arith.addf %30, %11 : vector<64x256xf32>
    %c0_14 = arith.constant 0 : index
    %c0_15 = arith.constant 0 : index
    %c0_16 = arith.constant 0 : index
    %32 = vector.load %arg5[%c0_14, %c0_15, %c0_16] : memref<1x64x256xf32, #tpu.memory_space<vmem>>, vector<1x64x256xf32>
    %33 = vector.shape_cast %32 : vector<1x64x256xf32> to vector<64x256xf32>
    %34 = vector.shape_cast %31 : vector<64x256xf32> to vector<1x64x256xf32>
    tpu.vector_store %arg5[%c0_14, %c0_15, %c0_16], %34 {strides = array<i32>} : memref<1x64x256xf32, #tpu.memory_space<vmem>>, vector<1x64x256xf32>,
    return
  }
  func.func @transform_0(%arg0: i32) -> (i32, i32, i32) {
    %c0_i32 = arith.constant 0 : i32
    %c0_i32_0 = arith.constant 0 : i32
    %c0_i32_1 = arith.constant 0 : i32
    return %arg0, %c0_i32, %c0_i32_0 : i32, i32, i32
  }
  func.func @transform_1(%arg0: i32) -> (i32, i32, i32) {
    %c0_i32 = arith.constant 0 : i32
    %c0_i32_0 = arith.constant 0 : i32
    %c0_i32_1 = arith.constant 0 : i32
    return %arg0, %c0_i32, %c0_i32_0 : i32, i32, i32
  }
  func.func @transform_2(%arg0: i32) -> (i32, i32) {
    %c0_i32 = arith.constant 0 : i32
    %c0_i32_0 = arith.constant 0 : i32
    %c0_i32_1 = arith.constant 0 : i32
    return %c0_i32, %c0_i32_0 : i32, i32
  }
  func.func @transform_3(%arg0: i32) -> (i32, i32) {
    %c0_i32 = arith.constant 0 : i32
    %c0_i32_0 = arith.constant 0 : i32
    %c0_i32_1 = arith.constant 0 : i32
    return %c0_i32, %c0_i32_0 : i32, i32
  }
  func.func @transform_4(%arg0: i32) -> (i32, i32, i32) {
    %c0_i32 = arith.constant 0 : i32
    %c0_i32_0 = arith.constant 0 : i32
    %c0_i32_1 = arith.constant 0 : i32
    return %arg0, %c0_i32, %c0_i32_0 : i32, i32, i32
  }
}

</mosaic_0001>

<llo_original>
// kernel: adaptive_point_norm_forward.1
$region0: #{adaptive_point_norm_forward.1}
  #allocation0 [shape = 'u32[]', space=smem, size = 0x4, offset = 0x4, fixed_abs, tag = 'smem constant byte address 0x4 - core index']
  #allocation1 [shape = 'u32[144,128]{1,0:T(1,128)}', space=vmem, size = 0x12000, scoped, tag = 'internal scratch']
  %s0 = inlined_call_operand.hbm [shape: f32[4,64,256], index: 0, kind: input, shape index: {}]
  %s1 = inlined_call_operand.vmem [shape: f32[4,32,256], index: 1, kind: input, shape index: {}]
  %s2 = inlined_call_operand.vmem [shape: bf16[128,32], index: 2, kind: input, shape index: {}]
  %s3 = inlined_call_operand.vmem [shape: f32[128,1], index: 3, kind: input, shape index: {}]
  %s4 = inlined_call_operand.hbm [shape: f32[4,64,256], index: 4, kind: output, shape index: {}]
  %s5 = sld [smem:[#allocation0]]
  $region53: #{adaptive_point_norm_forward.1} parent=0
    _
  %s7 = ssub.s32 1, %s5
  %s8 = scalar_select 0, %s7, %s5
  $region1: #{adaptive_point_norm_forward.1} parent=0
    #allocation2 [shape = 'u8[131072]{0}', space=vmem, size = 0x20000, scoped, tag = 'input window, operand 0']
    #allocation3 [shape = 's32[2]{0}', space=sflag, size = 0x8, scoped, tag = 'scoped memory for adaptive_point_norm_forward.1']
    #allocation4 [shape = 's32[2]{0}', space=sflag, size = 0x8, scoped, tag = 'scoped memory for adaptive_point_norm_forward.1']
    #allocation5 [shape = 'u8[131072]{0}', space=vmem, size = 0x20000, scoped, tag = 'output window, operand 0']
    %9 = vsyncpa [#allocation3], 0
    %s10 = scalar_lea.sflag [#allocation3], 1
    %11 = vsyncpa %s10, 0
    %12 = vsyncpa [#allocation4], 0
    %s13 = scalar_lea.sflag [#allocation4], 1
    %14 = vsyncpa %s13, 0
    loop: start=0, step=1, limit=6
    $region2: #{adaptive_point_norm_forward.1} parent=1 // loop_pre_header
      _
    $region3: #{adaptive_point_norm_forward.1} parent=1 // loop_header
      %s16 = sphi 0, %s20
      %p17 = scmp.ge.s32.totalorder %s16, 6
      %s26 = sphi 0, %s28
      %s29 = sphi 0, %s26
      %s30 = sphi 0, %s29
      %s46 = sphi 0, %s30
      %s52 = sphi 0, %s54
      %s55 = sphi 0, %s52
      %s56 = sphi 0, %s55
      %s72 = sphi 0, %s56
      %s76 = sphi 0, %s76
      %s78 = sphi 0, %s76
      %s79 = sphi 0, %s78
      %s93 = sphi 0, %s79
      %s97 = sphi 0, %s97
      %s99 = sphi 0, %s97
      %s100 = sphi 0, %s99
      %s114 = sphi 0, %s100
      %s120 = sphi 0, %s122
      %s123 = sphi 0, %s120
      %s124 = sphi 0, %s123
      %s140 = sphi 0, %s124
    $region4: #{adaptive_point_norm_forward.1} parent=1 // loop_header_branch
      %19 = sbr.rel (%p17) target = $region8
    $region5: #{adaptive_point_norm_forward.1} parent=1 // loop_body
      %s21 = ssub.s32 %s16, 1
      %s22 = ssub.s32 %s16, 2
      %s23 = sadd.s32 %s16, 1
      %s24 = ssub.s32 %s16, %s23
      %p25 = scmp.eq.s32.totalorder %s24, 0
      %s27 = sadd.s32 %s26, 1
      %s28 = scalar_select %p25, %s26, %s27
      %p31 = pneg %p25
      %p32 = scmp.eq.s32.totalorder %s16, 3
      %p33 = por %p31, %p32
      %p34 = scmp.ne.s32.totalorder %s26, %s29
      %p35 = scmp.eq.s32.totalorder %s16, 0
      %p36 = por %p34, %p35
      %p37 = scmp.ne.s32.totalorder %s26, %s29
      %p38 = scmp.eq.s32.totalorder %s21, 3
      %p39 = por %p37, %p38
      %p40 = scmp.ne.s32.totalorder %s29, %s30
      %p41 = scmp.eq.s32.totalorder %s21, 0
      %p42 = por %p40, %p41
      %p43 = scmp.ne.s32.totalorder %s29, %s30
      %p44 = scmp.eq.s32.totalorder %s22, 3
      %p45 = por %p43, %p44
      %p47 = scmp.ne.s32.totalorder %s30, %s46
      %p48 = scmp.eq.s32.totalorder %s22, 0
      %p49 = por %p47, %p48
      %s50 = ssub.s32 %s16, %s23
      %p51 = scmp.eq.s32.totalorder %s50, 0
      %s53 = sadd.s32 %s52, 1
      %s54 = scalar_select %p51, %s52, %s53
      %p57 = pneg %p51
      %p58 = scmp.eq.s32.totalorder %s16, 3
      %p59 = por %p57, %p58
      %p60 = scmp.ne.s32.totalorder %s52, %s55
      %p61 = scmp.eq.s32.totalorder %s16, 0
      %p62 = por %p60, %p61
      %p63 = scmp.ne.s32.totalorder %s52, %s55
      %p64 = scmp.eq.s32.totalorder %s21, 3
      %p65 = por %p63, %p64
      %p66 = scmp.ne.s32.totalorder %s55, %s56
      %p67 = scmp.eq.s32.totalorder %s21, 0
      %p68 = por %p66, %p67
      %p69 = scmp.ne.s32.totalorder %s55, %s56
      %p70 = scmp.eq.s32.totalorder %s22, 3
      %p71 = por %p69, %p70
      %p73 = scmp.ne.s32.totalorder %s56, %s72
      %p74 = scmp.eq.s32.totalorder %s22, 0
      %p75 = por %p73, %p74
      %s77 = sadd.s32 %s76, 1
      %p80 = scmp.eq.s32.totalorder %s16, 3
      %p81 = scmp.ne.s32.totalorder %s76, %s78
      %p82 = scmp.eq.s32.totalorder %s16, 0
      %p83 = por %p81, %p82
      %p84 = scmp.ne.s32.totalorder %s76, %s78
      %p85 = scmp.eq.s32.totalorder %s21, 3
      %p86 = por %p84, %p85
      %p87 = scmp.ne.s32.totalorder %s78, %s79
      %p88 = scmp.eq.s32.totalorder %s21, 0
      %p89 = por %p87, %p88
      %p90 = scmp.ne.s32.totalorder %s78, %s79
      %p91 = scmp.eq.s32.totalorder %s22, 3
      %p92 = por %p90, %p91
      %p94 = scmp.ne.s32.totalorder %s79, %s93
      %p95 = scmp.eq.s32.totalorder %s22, 0
      %p96 = por %p94, %p95
      %s98 = sadd.s32 %s97, 1
      %p101 = scmp.eq.s32.totalorder %s16, 3
      %p102 = scmp.ne.s32.totalorder %s97, %s99
      %p103 = scmp.eq.s32.totalorder %s16, 0
      %p104 = por %p102, %p103
      %p105 = scmp.ne.s32.totalorder %s97, %s99
      %p106 = scmp.eq.s32.totalorder %s21, 3
      %p107 = por %p105, %p106
      %p108 = scmp.ne.s32.totalorder %s99, %s100
      %p109 = scmp.eq.s32.totalorder %s21, 0
      %p110 = por %p108, %p109
      %p111 = scmp.ne.s32.totalorder %s99, %s100
      %p112 = scmp.eq.s32.totalorder %s22, 3
      %p113 = por %p111, %p112
      %p115 = scmp.ne.s32.totalorder %s100, %s114
      %p116 = scmp.eq.s32.totalorder %s22, 0
      %p117 = por %p115, %p116
      %s118 = ssub.s32 %s16, %s23
      %p119 = scmp.eq.s32.totalorder %s118, 0
      %s121 = sadd.s32 %s120, 1
      %s122 = scalar_select %p119, %s120, %s121
      %p125 = pneg %p119
      %p126 = scmp.eq.s32.totalorder %s16, 3
      %p127 = por %p125, %p126
      %p128 = scmp.ne.s32.totalorder %s120, %s123
      %p129 = scmp.eq.s32.totalorder %s16, 0
      %p130 = por %p128, %p129
      %p131 = scmp.ne.s32.totalorder %s120, %s123
      %p132 = scmp.eq.s32.totalorder %s21, 3
      %p133 = por %p131, %p132
      %p134 = scmp.ne.s32.totalorder %s123, %s124
      %p135 = scmp.eq.s32.totalorder %s21, 0
      %p136 = por %p134, %p135
      %p137 = scmp.ne.s32.totalorder %s123, %s124
      %p138 = scmp.eq.s32.totalorder %s22, 3
      %p139 = por %p137, %p138
      %p141 = scmp.ne.s32.totalorder %s124, %s140
      %p142 = scmp.eq.s32.totalorder %s22, 0
      %p143 = por %p141, %p142
      %p144 = scmp.le.s32.totalorder 1, %s16
      %p145 = scmp.lt.s32.totalorder %s16, 5
      %p146 = pnand %p144, %p145
      %p147 = pneg %p146
      // Predicated region
      $region9: #{adaptive_point_norm_forward.1} parent=5 // pred_check
        _
      $region10: #{adaptive_point_norm_forward.1} parent=5 // pred_check_branch
        %149 = sbr.rel (%p146) target = $region12
      $region11: #{adaptive_point_norm_forward.1} parent=5 // pred_region
        %s150 = ssub.s32 %s16, 1
        // Predicated region
        $region13: #{adaptive_point_norm_forward.1} parent=11 // pred_check
          %p151 = pneg %p89
        $region14: #{adaptive_point_norm_forward.1} parent=11 // pred_check_branch
          %153 = sbr.rel (%p151) target = $region16
        $region15: #{adaptive_point_norm_forward.1} parent=11 // pred_region
          _
        $region16: #{adaptive_point_norm_forward.1} parent=11 // pred_fallthru
          _
        // Predicated region
        $region17: #{adaptive_point_norm_forward.1} parent=11 // pred_check
          %p154 = pneg %p110
        $region18: #{adaptive_point_norm_forward.1} parent=11 // pred_check_branch
          %156 = sbr.rel (%p154) target = $region20
        $region19: #{adaptive_point_norm_forward.1} parent=11 // pred_region
          _
        $region20: #{adaptive_point_norm_forward.1} parent=11 // pred_fallthru
          _
      $region12: #{adaptive_point_norm_forward.1} parent=5 // pred_fallthru
        _
      %p157 = scmp.lt.s32.totalorder %s16, 4
      // Predicated region
      $region21: #{adaptive_point_norm_forward.1} parent=5 // pred_check
        %p158 = pneg %p157
      $region22: #{adaptive_point_norm_forward.1} parent=5 // pred_check_branch
        %160 = sbr.rel (%p158) target = $region24
      $region23: #{adaptive_point_norm_forward.1} parent=5 // pred_region
        // Predicated region
        $region25: #{adaptive_point_norm_forward.1} parent=23 // pred_check
          %p161 = pneg %p36
        $region26: #{adaptive_point_norm_forward.1} parent=23 // pred_check_branch
          %163 = sbr.rel (%p161) target = $region28
        $region27: #{adaptive_point_norm_forward.1} parent=23 // pred_region
          %s164 = sand.u32 %s26, 1
          %s165 = scalar_lea.sflag [#allocation3], %s164
          %s166 = sand.u32 %s26, 1
          %s167 = smul.addr %s166, 128
          %s168 = scalar_lea.vmem [#allocation2], %s167
          %s170 = ssub.s32 2048, 2048
          %171 = vsyncadd %s165, %s170
          %s172 = smul.addr %s16, 16
          %s173 = smul.addr %s172, 128
          %s174 = scalar_lea.hbm %s0, %s173
          %s175 = sshll.u32 %s168, 4
          %s176 = int_to_ptr.vmem [resolvable:$true] %s175
          %181 = dma.hbm_to_vmem [thread:$0]  %s174, 2048, %s176, %s165, 256, 256, 16
        $region28: #{adaptive_point_norm_forward.1} parent=23 // pred_fallthru
          _
        // Predicated region
        $region29: #{adaptive_point_norm_forward.1} parent=23 // pred_check
          %p182 = pneg %p62
        $region30: #{adaptive_point_norm_forward.1} parent=23 // pred_check_branch
          %184 = sbr.rel (%p182) target = $region32
        $region31: #{adaptive_point_norm_forward.1} parent=23 // pred_region
          %p185 = scmp.lt.s32.totalorder %s16, 3
          %s186 = scalar_select %p185, %s16, 3
          %s187 = smul.addr %s186, 8
          %s188 = smul.addr %s187, 8
          %s189 = scalar_lea.vmem %s1, %s188
        $region32: #{adaptive_point_norm_forward.1} parent=23 // pred_fallthru
          _
      $region24: #{adaptive_point_norm_forward.1} parent=5 // pred_fallthru
        _
      %p190 = scmp.le.s32.totalorder 1, %s16
      %p191 = scmp.lt.s32.totalorder %s16, 5
      %p192 = pnand %p190, %p191
      %p193 = pneg %p192
      // Predicated region
      $region33: #{adaptive_point_norm_forward.1} parent=5 // pred_check
        _
      $region34: #{adaptive_point_norm_forward.1} parent=5 // pred_check_branch
        %195 = sbr.rel (%p192) target = $region36
      $region35: #{adaptive_point_norm_forward.1} parent=5 // pred_region
        %s196 = ssub.s32 %s16, 1
        %s197 = sand.u32 %s29, 1
        %s198 = scalar_lea.sflag [#allocation3], %s197
        %s199 = sand.u32 %s29, 1
        %s200 = smul.addr %s199, 128
        %s201 = scalar_lea.vmem [#allocation2], %s200
        // Predicated region
        $region37: #{adaptive_point_norm_forward.1} parent=35 // pred_check
          %p202 = pneg %p42
        $region38: #{adaptive_point_norm_forward.1} parent=35 // pred_check_branch
          %204 = sbr.rel (%p202) target = $region40
        $region39: #{adaptive_point_norm_forward.1} parent=35 // pred_region
          %205 = dma.done %s198, 2048
        $region40: #{adaptive_point_norm_forward.1} parent=35 // pred_fallthru
          _
        %s206 = sand.u32 %s29, 1
        %s207 = scalar_lea.sflag [#allocation3], %s206
        %s208 = sand.u32 %s29, 1
        %s209 = smul.addr %s208, 128
        %s210 = scalar_lea.vmem [#allocation2], %s209
        %p211 = pneg %p42
        %p212 = pneg %p39
        %p213 = scmp.lt.s32.totalorder %s21, 3
        %s214 = scalar_select %p213, %s21, 3
        %s215 = smul.addr %s214, 8
        %s216 = smul.addr %s215, 8
        %s217 = scalar_lea.vmem %s1, %s216
        %p218 = pneg %p68
        %p219 = pneg %p65
        %p220 = pneg %p89
        %p221 = pneg %p86
        %p222 = pneg %p110
        %p223 = pneg %p107
        %p224 = pneg %p136
        %p225 = pneg %p133
        %s226 = sand.u32 %s123, 1
        %s227 = scalar_lea.sflag [#allocation4], %s226
        %s228 = sand.u32 %s123, 1
        %s229 = smul.addr %s228, 128
        %s230 = scalar_lea.vmem [#allocation5], %s229
        %p231 = scmp.lt.s32.totalorder %s21, 3
        %s232 = scalar_select %p231, %s21, 3
        %s233 = smul.addr %s232, 8
        %s234 = smul.addr %s233, 8
        %s235 = scalar_lea.vmem %s1, %s234
        %v237 = vld [vmem:[%s201] sm:$0xff]
        %v238 = vld [vmem:[%s201 + $0x8] sm:$0xff]
        %v239 = vld [vmem:[%s201 + $0x10] sm:$0xff]
        %v240 = vld [vmem:[%s201 + $0x18] sm:$0xff]
        %v241 = vld [vmem:[%s201 + $0x20] sm:$0xff]
        %v242 = vld [vmem:[%s201 + $0x28] sm:$0xff]
        %v243 = vld [vmem:[%s201 + $0x30] sm:$0xff]
        %v244 = vld [vmem:[%s201 + $0x38] sm:$0xff]
        %v245 = vld [vmem:[%s201 + $0x40] sm:$0xff]
        %v246 = vld [vmem:[%s201 + $0x48] sm:$0xff]
        %v247 = vld [vmem:[%s201 + $0x50] sm:$0xff]
        %v248 = vld [vmem:[%s201 + $0x58] sm:$0xff]
        %v249 = vld [vmem:[%s201 + $0x60] sm:$0xff]
        %v250 = vld [vmem:[%s201 + $0x68] sm:$0xff]
        %v251 = vld [vmem:[%s201 + $0x70] sm:$0xff]
        %v252 = vld [vmem:[%s201 + $0x78] sm:$0xff]
        %v253 = vld [vmem:[%s235] sm:$0xff]
        %v254 = vld [vmem:[%s235 + $0x8] sm:$0xff]
        %v255 = vld [vmem:[%s235 + $0x10] sm:$0xff]
        %v256 = vld [vmem:[%s235 + $0x18] sm:$0xff]
        %v257 = vld [vmem:[%s235 + $0x20] sm:$0xff]
        %v258 = vld [vmem:[%s235 + $0x28] sm:$0xff]
        %v259 = vld [vmem:[%s235 + $0x30] sm:$0xff]
        %v260 = vld [vmem:[%s235 + $0x38] sm:$0xff]
        %v261 = vpack.c.bf16 %v255, %v253
        %v262 = vpack.c.bf16 %v256, %v254
        %v263 = vpack.c.bf16 %v259, %v257
        %v264 = vpack.c.bf16 %v260, %v258
        %v265 = vld [vmem:[%s2] sm:$0xf]
        %v266 = vld [vmem:[%s2 + $0x4] sm:$0xf]
        %v267 = vld [vmem:[%s2 + $0x8] sm:$0xf]
        %v268 = vld [vmem:[%s2 + $0xc] sm:$0xf]
        %v269 = vld [vmem:[%s2 + $0x10] sm:$0xf]
        %v270 = vld [vmem:[%s2 + $0x14] sm:$0xf]
        %v271 = vld [vmem:[%s2 + $0x18] sm:$0xf]
        %v272 = vld [vmem:[%s2 + $0x1c] sm:$0xf]
        %v273 = vld [vmem:[%s2 + $0x20] sm:$0xf]
        %v274 = vld [vmem:[%s2 + $0x24] sm:$0xf]
        %v275 = vld [vmem:[%s2 + $0x28] sm:$0xf]
        %v276 = vld [vmem:[%s2 + $0x2c] sm:$0xf]
        %v277 = vld [vmem:[%s2 + $0x30] sm:$0xf]
        %v278 = vld [vmem:[%s2 + $0x34] sm:$0xf]
        %v279 = vld [vmem:[%s2 + $0x38] sm:$0xf]
        %v280 = vld [vmem:[%s2 + $0x3c] sm:$0xf]
        %v281 = vld [vmem:[%s3] sm:$0xff]
        %v282 = vld [vmem:[%s3 + $0x8] sm:$0xff]
        %v283 = vld [vmem:[%s3 + $0x10] sm:$0xff]
        %v284 = vld [vmem:[%s3 + $0x18] sm:$0xff]
        %v285 = vld [vmem:[%s3 + $0x20] sm:$0xff]
        %v286 = vld [vmem:[%s3 + $0x28] sm:$0xff]
        %v287 = vld [vmem:[%s3 + $0x30] sm:$0xff]
        %v288 = vld [vmem:[%s3 + $0x38] sm:$0xff]
        %v289 = vld [vmem:[%s3 + $0x40] sm:$0xff]
        %v290 = vld [vmem:[%s3 + $0x48] sm:$0xff]
        %v291 = vld [vmem:[%s3 + $0x50] sm:$0xff]
        %v292 = vld [vmem:[%s3 + $0x58] sm:$0xff]
        %v293 = vld [vmem:[%s3 + $0x60] sm:$0xff]
        %v294 = vld [vmem:[%s3 + $0x68] sm:$0xff]
        %v295 = vld [vmem:[%s3 + $0x70] sm:$0xff]
        %v296 = vld [vmem:[%s3 + $0x78] sm:$0xff]
        %298 = vset.pattern.permute.xlu0 0
        %299 = vperm.xlu0 %298, %v281
        %v300 = vpop.permute.xlu0 %299
        %303 = vset.pattern.permute.xlu0 0
        %304 = vperm.xlu0 %303, %v282
        %v305 = vpop.permute.xlu0 %304
        %308 = vset.pattern.permute.xlu0 0
        %309 = vperm.xlu0 %308, %v283
        %v310 = vpop.permute.xlu0 %309
        %313 = vset.pattern.permute.xlu0 0
        %314 = vperm.xlu0 %313, %v284
        %v315 = vpop.permute.xlu0 %314
        %318 = vset.pattern.permute.xlu0 0
        %319 = vperm.xlu0 %318, %v285
        %v320 = vpop.permute.xlu0 %319
        %323 = vset.pattern.permute.xlu0 0
        %324 = vperm.xlu0 %323, %v286
        %v325 = vpop.permute.xlu0 %324
        %328 = vset.pattern.permute.xlu0 0
        %329 = vperm.xlu0 %328, %v287
        %v330 = vpop.permute.xlu0 %329
        %333 = vset.pattern.permute.xlu0 0
        %334 = vperm.xlu0 %333, %v288
        %v335 = vpop.permute.xlu0 %334
        %338 = vset.pattern.permute.xlu0 0
        %339 = vperm.xlu0 %338, %v289
        %v340 = vpop.permute.xlu0 %339
        %343 = vset.pattern.permute.xlu0 0
        %344 = vperm.xlu0 %343, %v290
        %v345 = vpop.permute.xlu0 %344
        %348 = vset.pattern.permute.xlu0 0
        %349 = vperm.xlu0 %348, %v291
        %v350 = vpop.permute.xlu0 %349
        %353 = vset.pattern.permute.xlu0 0
        %354 = vperm.xlu0 %353, %v292
        %v355 = vpop.permute.xlu0 %354
        %358 = vset.pattern.permute.xlu0 0
        %359 = vperm.xlu0 %358, %v293
        %v360 = vpop.permute.xlu0 %359
        %363 = vset.pattern.permute.xlu0 0
        %364 = vperm.xlu0 %363, %v294
        %v365 = vpop.permute.xlu0 %364
        %368 = vset.pattern.permute.xlu0 0
        %369 = vperm.xlu0 %368, %v295
        %v370 = vpop.permute.xlu0 %369
        %373 = vset.pattern.permute.xlu0 0
        %374 = vperm.xlu0 %373, %v296
        %v375 = vpop.permute.xlu0 %374
        %v393 = vunpack.c.l.b16 %v265
        %v394 = vunpack.c.l.b16 %v266
        %v395 = vunpack.c.l.b16 %v267
        %v396 = vunpack.c.l.b16 %v268
        %v397 = vunpack.c.l.b16 %v269
        %v398 = vunpack.c.l.b16 %v270
        %v399 = vunpack.c.l.b16 %v271
        %v400 = vunpack.c.l.b16 %v272
        %v401 = vunpack.c.l.b16 %v273
        %v402 = vunpack.c.l.b16 %v274
        %v403 = vunpack.c.l.b16 %v275
        %v404 = vunpack.c.l.b16 %v276
        %v405 = vunpack.c.l.b16 %v277
        %v406 = vunpack.c.l.b16 %v278
        %v407 = vunpack.c.l.b16 %v279
        %v408 = vunpack.c.l.b16 %v280
        %v409 = vpack.c.b16 %v394, %v393
        %v410 = vpack.c.b16 %v396, %v395
        %v411 = vpack.c.b16 %v398, %v397
        %v412 = vpack.c.b16 %v400, %v399
        %v413 = vpack.c.b16 %v402, %v401
        %v414 = vpack.c.b16 %v404, %v403
        %v415 = vpack.c.b16 %v406, %v405
        %v416 = vpack.c.b16 %v408, %v407
        %vm417 = vcmask 261120
        %v419 = vsel %vm417, %v409, 0
        %v422 = vsel %vm417, %v410, 0
        %v425 = vsel %vm417, %v411, 0
        %v428 = vsel %vm417, %v412, 0
        %v431 = vsel %vm417, %v413, 0
        %v434 = vsel %vm417, %v414, 0
        %v437 = vsel %vm417, %v415, 0
        %v440 = vsel %vm417, %v416, 0
        %442 = vmatprep.subr.bf16.mxu0 %v262
        %443 = vmatpush1.bf16.msra.mxu0 %v261
        %444 = vmatprep.subr.bf16.mxu0 %v264
        %445 = vmatpush1.bf16.msra.mxu0 %v263
        %446 = vmatprep.subr.bf16.mxu0 0
        %447 = vmatpush1.bf16.msra.mxu0 0
        %448 = vmatprep.subr.bf16.mxu0 0
        %449 = vmatpush1.bf16.msra.mxu0 0
        %450 = vmatprep.subr.bf16.mxu0 0
        %451 = vmatpush1.bf16.msra.mxu0 0
        %452 = vmatprep.subr.bf16.mxu0 0
        %453 = vmatpush1.bf16.msra.mxu0 0
        %454 = vmatprep.subr.bf16.mxu0 0
        %455 = vmatpush1.bf16.msra.mxu0 0
        %456 = vmatprep.subr.bf16.mxu0 0
        %457 = vmatpush1.bf16.msra.mxu0 0
        %458 = vmatprep.subr.bf16.mxu0 0
        %459 = vmatpush1.bf16.msra.mxu0 0
        %460 = vmatprep.subr.bf16.mxu0 0
        %461 = vmatpush1.bf16.msra.mxu0 0
        %462 = vmatprep.subr.bf16.mxu0 0
        %463 = vmatpush1.bf16.msra.mxu0 0
        %464 = vmatprep.subr.bf16.mxu0 0
        %465 = vmatpush1.bf16.msra.mxu0 0
        %466 = vmatprep.subr.bf16.mxu0 0
        %467 = vmatpush1.bf16.msra.mxu0 0
        %468 = vmatprep.subr.bf16.mxu0 0
        %469 = vmatpush1.bf16.msra.mxu0 0
        %470 = vmatprep.subr.bf16.mxu0 0
        %471 = vmatpush1.bf16.msra.mxu0 0
        %472 = vmatprep.subr.bf16.mxu0 0
        %473 = vmatpush1.bf16.msra.mxu0 0
        %474 = vmatprep.mubr.bf16.mxu0 0
        %475 = vmatmul.mubr.bf16.gmra.mrb[0].mxu0 %v419
        %v476 = vpop.f32.mrb[0].mxu0
        %v477 = vadd.f32 %v300, %v476
        %v478 = vpop.f32.mrb[0].mxu0
        %v479 = vadd.f32 %v300, %v478
        %v480 = vpop.f32.mrb[0].mxu0
        %v481 = vadd.f32 %v305, %v480
        %v482 = vpop.f32.mrb[0].mxu0
        %v483 = vadd.f32 %v305, %v482
        %484 = vmatprep.mubr.bf16.mxu0 0
        %485 = vmatmul.mubr.bf16.gmra.mrb[0].mxu0 %v422
        %v486 = vpop.f32.mrb[0].mxu0
        %v487 = vadd.f32 %v310, %v486
        %v488 = vpop.f32.mrb[0].mxu0
        %v489 = vadd.f32 %v310, %v488
        %v490 = vpop.f32.mrb[0].mxu0
        %v491 = vadd.f32 %v315, %v490
        %v492 = vpop.f32.mrb[0].mxu0
        %v493 = vadd.f32 %v315, %v492
        %494 = vmatprep.mubr.bf16.mxu0 0
        %495 = vmatmul.mubr.bf16.gmra.mrb[0].mxu0 %v425
        %v496 = vpop.f32.mrb[0].mxu0
        %v497 = vadd.f32 %v320, %v496
        %v498 = vpop.f32.mrb[0].mxu0
        %v499 = vadd.f32 %v320, %v498
        %v500 = vpop.f32.mrb[0].mxu0
        %v501 = vadd.f32 %v325, %v500
        %v502 = vpop.f32.mrb[0].mxu0
        %v503 = vadd.f32 %v325, %v502
        %504 = vmatprep.mubr.bf16.mxu0 0
        %505 = vmatmul.mubr.bf16.gmra.mrb[0].mxu0 %v428
        %v506 = vpop.f32.mrb[0].mxu0
        %v507 = vadd.f32 %v330, %v506
        %v508 = vpop.f32.mrb[0].mxu0
        %v509 = vadd.f32 %v330, %v508
        %v510 = vpop.f32.mrb[0].mxu0
        %v511 = vadd.f32 %v335, %v510
        %v512 = vpop.f32.mrb[0].mxu0
        %v513 = vadd.f32 %v335, %v512
        %514 = vmatprep.mubr.bf16.mxu0 0
        %515 = vmatmul.mubr.bf16.gmra.mrb[0].mxu0 %v431
        %v516 = vpop.f32.mrb[0].mxu0
        %v517 = vadd.f32 %v340, %v516
        %v518 = vpop.f32.mrb[0].mxu0
        %v519 = vadd.f32 %v340, %v518
        %v520 = vpop.f32.mrb[0].mxu0
        %v521 = vadd.f32 %v345, %v520
        %v522 = vpop.f32.mrb[0].mxu0
        %v523 = vadd.f32 %v345, %v522
        %524 = vmatprep.mubr.bf16.mxu0 0
        %525 = vmatmul.mubr.bf16.gmra.mrb[0].mxu0 %v434
        %v526 = vpop.f32.mrb[0].mxu0
        %v527 = vadd.f32 %v350, %v526
        %v528 = vpop.f32.mrb[0].mxu0
        %v529 = vadd.f32 %v350, %v528
        %v530 = vpop.f32.mrb[0].mxu0
        %v531 = vadd.f32 %v355, %v530
        %v532 = vpop.f32.mrb[0].mxu0
        %v533 = vadd.f32 %v355, %v532
        %534 = vmatprep.mubr.bf16.mxu0 0
        %535 = vmatmul.mubr.bf16.gmra.mrb[0].mxu0 %v437
        %v536 = vpop.f32.mrb[0].mxu0
        %v537 = vadd.f32 %v360, %v536
        %v538 = vpop.f32.mrb[0].mxu0
        %v539 = vadd.f32 %v360, %v538
        %v540 = vpop.f32.mrb[0].mxu0
        %v541 = vadd.f32 %v365, %v540
        %v542 = vpop.f32.mrb[0].mxu0
        %v543 = vadd.f32 %v365, %v542
        %544 = vmatprep.mubr.bf16.mxu0 0
        %545 = vmatmul.mubr.bf16.gmra.mrb[0].mxu0 %v440
        %v546 = vpop.f32.mrb[0].mxu0
        %v547 = vadd.f32 %v370, %v546
        %v548 = vpop.f32.mrb[0].mxu0
        %v549 = vadd.f32 %v370, %v548
        %v550 = vpop.f32.mrb[0].mxu0
        %v551 = vadd.f32 %v375, %v550
        %v552 = vpop.f32.mrb[0].mxu0
        %v553 = vadd.f32 %v375, %v552
        %554 = vdwg.mxu0
        %v555 = vadd.f32 %v237, %v238
        %556 = vadd.xlane.f32.xlu0 %v555
        %v557 = vpop.xlane.xlu0 %556
        %v558 = vadd.f32 %v239, %v240
        %559 = vadd.xlane.f32.xlu0 %v558
        %v560 = vpop.xlane.xlu0 %559
        %v561 = vadd.f32 %v241, %v242
        %562 = vadd.xlane.f32.xlu0 %v561
        %v563 = vpop.xlane.xlu0 %562
        %v564 = vadd.f32 %v243, %v244
        %565 = vadd.xlane.f32.xlu0 %v564
        %v566 = vpop.xlane.xlu0 %565
        %v567 = vadd.f32 %v245, %v246
        %568 = vadd.xlane.f32.xlu0 %v567
        %v569 = vpop.xlane.xlu0 %568
        %v570 = vadd.f32 %v247, %v248
        %571 = vadd.xlane.f32.xlu0 %v570
        %v572 = vpop.xlane.xlu0 %571
        %v573 = vadd.f32 %v249, %v250
        %574 = vadd.xlane.f32.xlu0 %v573
        %v575 = vpop.xlane.xlu0 %574
        %v576 = vadd.f32 %v251, %v252
        %577 = vadd.xlane.f32.xlu0 %v576
        %v578 = vpop.xlane.xlu0 %577
        %v579 = vrcp.pop 256.0
        %v580 = vmul.f32 %v557, %v579
        %v581 = vmul.f32 %v560, %v579
        %v582 = vmul.f32 %v563, %v579
        %v583 = vmul.f32 %v566, %v579
        %v584 = vmul.f32 %v569, %v579
        %v585 = vmul.f32 %v572, %v579
        %v586 = vmul.f32 %v575, %v579
        %v587 = vmul.f32 %v578, %v579
        %v588 = vmul.f32 %v237, %v237
        %v589 = vmul.f32 %v238, %v238
        %v590 = vmul.f32 %v239, %v239
        %v591 = vmul.f32 %v240, %v240
        %v592 = vmul.f32 %v241, %v241
        %v593 = vmul.f32 %v242, %v242
        %v594 = vmul.f32 %v243, %v243
        %v595 = vmul.f32 %v244, %v244
        %v596 = vmul.f32 %v245, %v245
        %v597 = vmul.f32 %v246, %v246
        %v598 = vmul.f32 %v247, %v247
        %v599 = vmul.f32 %v248, %v248
        %v600 = vmul.f32 %v249, %v249
        %v601 = vmul.f32 %v250, %v250
        %v602 = vmul.f32 %v251, %v251
        %v603 = vmul.f32 %v252, %v252
        %v604 = vadd.f32 %v588, %v589
        %605 = vadd.xlane.f32.xlu0 %v604
        %v606 = vpop.xlane.xlu0 %605
        %v607 = vadd.f32 %v590, %v591
        %608 = vadd.xlane.f32.xlu0 %v607
        %v609 = vpop.xlane.xlu0 %608
        %v610 = vadd.f32 %v592, %v593
        %611 = vadd.xlane.f32.xlu0 %v610
        %v612 = vpop.xlane.xlu0 %611
        %v613 = vadd.f32 %v594, %v595
        %614 = vadd.xlane.f32.xlu0 %v613
        %v615 = vpop.xlane.xlu0 %614
        %v616 = vadd.f32 %v596, %v597
        %617 = vadd.xlane.f32.xlu0 %v616
        %v618 = vpop.xlane.xlu0 %617
        %v619 = vadd.f32 %v598, %v599
        %620 = vadd.xlane.f32.xlu0 %v619
        %v621 = vpop.xlane.xlu0 %620
        %v622 = vadd.f32 %v600, %v601
        %623 = vadd.xlane.f32.xlu0 %v622
        %v624 = vpop.xlane.xlu0 %623
        %v625 = vadd.f32 %v602, %v603
        %626 = vadd.xlane.f32.xlu0 %v625
        %v627 = vpop.xlane.xlu0 %626
        %v628 = vmul.f32 %v606, %v579
        %v629 = vmul.f32 %v609, %v579
        %v630 = vmul.f32 %v612, %v579
        %v631 = vmul.f32 %v615, %v579
        %v632 = vmul.f32 %v618, %v579
        %v633 = vmul.f32 %v621, %v579
        %v634 = vmul.f32 %v624, %v579
        %v635 = vmul.f32 %v627, %v579
        %v636 = vmul.f32 %v580, %v580
        %v637 = vmul.f32 %v581, %v581
        %v638 = vmul.f32 %v582, %v582
        %v639 = vmul.f32 %v583, %v583
        %v640 = vmul.f32 %v584, %v584
        %v641 = vmul.f32 %v585, %v585
        %v642 = vmul.f32 %v586, %v586
        %v643 = vmul.f32 %v587, %v587
        %v644 = vsub.f32 %v628, %v636
        %v645 = vsub.f32 %v629, %v637
        %v646 = vsub.f32 %v630, %v638
        %v647 = vsub.f32 %v631, %v639
        %v648 = vsub.f32 %v632, %v640
        %v649 = vsub.f32 %v633, %v641
        %v650 = vsub.f32 %v634, %v642
        %v651 = vsub.f32 %v635, %v643
        %v652 = vsub.f32 %v237, %v580
        %v653 = vsub.f32 %v238, %v580
        %v654 = vsub.f32 %v239, %v581
        %v655 = vsub.f32 %v240, %v581
        %v656 = vsub.f32 %v241, %v582
        %v657 = vsub.f32 %v242, %v582
        %v658 = vsub.f32 %v243, %v583
        %v659 = vsub.f32 %v244, %v583
        %v660 = vsub.f32 %v245, %v584
        %v661 = vsub.f32 %v246, %v584
        %v662 = vsub.f32 %v247, %v585
        %v663 = vsub.f32 %v248, %v585
        %v664 = vsub.f32 %v249, %v586
        %v665 = vsub.f32 %v250, %v586
        %v666 = vsub.f32 %v251, %v587
        %v667 = vsub.f32 %v252, %v587
        %v668 = vadd.f32 %v644, 1e-05
        %v669 = vadd.f32 %v645, 1e-05
        %v670 = vadd.f32 %v646, 1e-05
        %v671 = vadd.f32 %v647, 1e-05
        %v672 = vadd.f32 %v648, 1e-05
        %v673 = vadd.f32 %v649, 1e-05
        %v674 = vadd.f32 %v650, 1e-05
        %v675 = vadd.f32 %v651, 1e-05
        %v676 = vrsqrt.pop %v668
        %v677 = vrsqrt.pop %v669
        %v678 = vrsqrt.pop %v670
        %v679 = vrsqrt.pop %v671
        %v680 = vrsqrt.pop %v672
        %v681 = vrsqrt.pop %v673
        %v682 = vrsqrt.pop %v674
        %v683 = vrsqrt.pop %v675
        %v684 = vmul.f32 %v652, %v676
        %v685 = vmul.f32 %v653, %v676
        %v686 = vmul.f32 %v654, %v677
        %v687 = vmul.f32 %v655, %v677
        %v688 = vmul.f32 %v656, %v678
        %v689 = vmul.f32 %v657, %v678
        %v690 = vmul.f32 %v658, %v679
        %v691 = vmul.f32 %v659, %v679
        %v692 = vmul.f32 %v660, %v680
        %v693 = vmul.f32 %v661, %v680
        %v694 = vmul.f32 %v662, %v681
        %v695 = vmul.f32 %v663, %v681
        %v696 = vmul.f32 %v664, %v682
        %v697 = vmul.f32 %v665, %v682
        %v698 = vmul.f32 %v666, %v683
        %v699 = vmul.f32 %v667, %v683
        %v700 = vmul.f32 %v477, %v684
        %v701 = vmul.f32 %v479, %v685
        %v702 = vmul.f32 %v481, %v686
        %v703 = vmul.f32 %v483, %v687
        %v704 = vmul.f32 %v487, %v688
        %v705 = vmul.f32 %v489, %v689
        %v706 = vmul.f32 %v491, %v690
        %v707 = vmul.f32 %v493, %v691
        %v708 = vmul.f32 %v497, %v692
        %v709 = vmul.f32 %v499, %v693
        %v710 = vmul.f32 %v501, %v694
        %v711 = vmul.f32 %v503, %v695
        %v712 = vmul.f32 %v507, %v696
        %v713 = vmul.f32 %v509, %v697
        %v714 = vmul.f32 %v511, %v698
        %v715 = vmul.f32 %v513, %v699
        %v716 = vadd.f32 %v700, %v517
        %v717 = vadd.f32 %v701, %v519
        %v718 = vadd.f32 %v702, %v521
        %v719 = vadd.f32 %v703, %v523
        %v720 = vadd.f32 %v704, %v527
        %v721 = vadd.f32 %v705, %v529
        %v722 = vadd.f32 %v706, %v531
        %v723 = vadd.f32 %v707, %v533
        %v724 = vadd.f32 %v708, %v537
        %v725 = vadd.f32 %v709, %v539
        %v726 = vadd.f32 %v710, %v541
        %v727 = vadd.f32 %v711, %v543
        %v728 = vadd.f32 %v712, %v547
        %v729 = vadd.f32 %v713, %v549
        %v730 = vadd.f32 %v714, %v551
        %v731 = vadd.f32 %v715, %v553
        %732 = vst [vmem:[%s230] sm:$0xff] %v716
        %733 = vst [vmem:[%s230 + $0x8] sm:$0xff] %v717
        %734 = vst [vmem:[%s230 + $0x10] sm:$0xff] %v718
        %735 = vst [vmem:[%s230 + $0x18] sm:$0xff] %v719
        %736 = vst [vmem:[%s230 + $0x20] sm:$0xff] %v720
        %737 = vst [vmem:[%s230 + $0x28] sm:$0xff] %v721
        %738 = vst [vmem:[%s230 + $0x30] sm:$0xff] %v722
        %739 = vst [vmem:[%s230 + $0x38] sm:$0xff] %v723
        %740 = vst [vmem:[%s230 + $0x40] sm:$0xff] %v724
        %741 = vst [vmem:[%s230 + $0x48] sm:$0xff] %v725
        %742 = vst [vmem:[%s230 + $0x50] sm:$0xff] %v726
        %743 = vst [vmem:[%s230 + $0x58] sm:$0xff] %v727
        %744 = vst [vmem:[%s230 + $0x60] sm:$0xff] %v728
        %745 = vst [vmem:[%s230 + $0x68] sm:$0xff] %v729
        %746 = vst [vmem:[%s230 + $0x70] sm:$0xff] %v730
        %747 = vst [vmem:[%s230 + $0x78] sm:$0xff] %v731
        %s748 = sand.u32 %s123, 1
        %s749 = scalar_lea.sflag [#allocation4], %s748
        %s750 = sand.u32 %s123, 1
        %s751 = smul.addr %s750, 128
        %s752 = scalar_lea.vmem [#allocation5], %s751
        // Predicated region
        $region41: #{adaptive_point_norm_forward.1} parent=35 // pred_check
          %p753 = pneg %p133
        $region42: #{adaptive_point_norm_forward.1} parent=35 // pred_check_branch
          %755 = sbr.rel (%p753) target = $region44
        $region43: #{adaptive_point_norm_forward.1} parent=35 // pred_region
          %s757 = ssub.s32 2048, 2048
          %758 = vsyncadd %s749, %s757
          %s759 = smul.addr %s21, 16
          %s760 = smul.addr %s759, 128
          %s761 = scalar_lea.hbm %s4, %s760
          %s762 = sshll.u32 %s752, 4
          %s763 = int_to_ptr.vmem [resolvable:$true] %s762
          %768 = dma.vmem_to_hbm [thread:$0]  %s763, 2048, %s761, %s749, 256, 256, 16
        $region44: #{adaptive_point_norm_forward.1} parent=35 // pred_fallthru
          _
      $region36: #{adaptive_point_norm_forward.1} parent=5 // pred_fallthru
        _
      %p769 = scmp.le.s32.totalorder 2, %s16
      // Predicated region
      $region45: #{adaptive_point_norm_forward.1} parent=5 // pred_check
        %p770 = pneg %p769
      $region46: #{adaptive_point_norm_forward.1} parent=5 // pred_check_branch
        %772 = sbr.rel (%p770) target = $region48
      $region47: #{adaptive_point_norm_forward.1} parent=5 // pred_region
        %s773 = ssub.s32 %s16, 2
        // Predicated region
        $region49: #{adaptive_point_norm_forward.1} parent=47 // pred_check
          %p774 = pneg %p139
        $region50: #{adaptive_point_norm_forward.1} parent=47 // pred_check_branch
          %776 = sbr.rel (%p774) target = $region52
        $region51: #{adaptive_point_norm_forward.1} parent=47 // pred_region
          %s777 = sand.u32 %s124, 1
          %s778 = scalar_lea.sflag [#allocation4], %s777
          %s779 = sand.u32 %s124, 1
          %s780 = smul.addr %s779, 128
          %s781 = scalar_lea.vmem [#allocation5], %s780
          %782 = dma.done %s778, 2048
        $region52: #{adaptive_point_norm_forward.1} parent=47 // pred_fallthru
          _
      $region48: #{adaptive_point_norm_forward.1} parent=5 // pred_fallthru
        _
    $region6: #{adaptive_point_norm_forward.1} parent=1 // loop_footer
      %s20 = sadd.s32 1, %s16
    $region7: #{adaptive_point_norm_forward.1} parent=1 // loop_footer_branch
      %15 = sbr.rel target = $region3
    $region8: #{adaptive_point_norm_forward.1} parent=1 // loop_exit
      _
    %783 = vsyncpa [#allocation3], 1
    %s784 = scalar_lea.sflag [#allocation3], 1
    %785 = vsyncpa %s784, 1
    %786 = vsyncpa [#allocation4], 1
    %s787 = scalar_lea.sflag [#allocation4], 1
    %788 = vsyncpa %s787, 1

</llo_original>
